<compile_context>
chip_gen: v7x
topology: tpu7x:2x2x1
jax: 0.10.0
libtpu: 0.0.40
codegen_flags: <defaults>
</compile_context>

<pallas_src>
import jax
import jax.numpy as jnp
from jax.experimental import pallas as pl
from jax.experimental.pallas import tpu as pltpu


def _round_up(n: int, m: int) -> int:
    return ((n + m - 1) // m) * m


def _sigmoid(z):
    # Single EUP push (tanh); saturates cleanly to 0/1 for large |z|.
    return 0.5 * jnp.tanh(0.5 * z) + 0.5


def _pack_params(params):
    """Pack 2-D f32 params into one lane-padded slab.

    Each param starts at a sublane offset that is a multiple of 8 so the
    in-kernel static slices stay tile-aligned.  Returns (slab, offsets) where
    offsets[i] = (row_offset, rows, cols).
    """
    lane_w = _round_up(max(p.shape[1] for p in params), 128)
    offsets, row = [], 0
    for p in params:
        r, c = p.shape
        offsets.append((row, r, c))
        row += _round_up(r, 8)
    slab = jnp.zeros((_round_up(row, 8), lane_w), jnp.float32)
    for p, (off, r, c) in zip(params, offsets):
        slab = slab.at[off:off + r, :c].set(p.astype(jnp.float32))
    return slab, offsets


def _make_mlp_kernel(n_hidden: int, in_dim: int, offsets):
    """Kernel for one feature-major (features, TILE_B) batch tile."""

    def kernel(x_ref, p_ref, out_ref):
        def param(idx):
            off, r, c = offsets[idx]
            return p_ref[off:off + r, 0:c]          # static slice -> cheap view/load

        h = x_ref[...]                              # (in_dim, TILE_B) f32

        for i in range(n_hidden):
            W = param(2 * i)                        # (NL[i+1], NL[i])
            b = param(2 * i + 1)                    # (NL[i+1], 1)
            if i == 0 and in_dim == 1:
                # K=1 layer: (H,1)*(1,TILE_B) broadcast outer product on the VPU;
                # an MXU matmul would pay full fill/drain for 32 MACs.
                z = W * h + b
            else:
                z = jnp.dot(W.astype(jnp.bfloat16), h.astype(jnp.bfloat16),
                            preferred_element_type=jnp.float32) + b
            h = _sigmoid(z)

        W_head = param(2 * n_hidden)                # (8, H), rows 3..7 zero-padded
        b_head = param(2 * n_hidden + 1)            # (8, 1)
        out_ref[...] = (
            jnp.dot(W_head.astype(jnp.bfloat16), h.astype(jnp.bfloat16),
                    preferred_element_type=jnp.float32) + b_head
        ).astype(out_ref.dtype)

    return kernel


def pinn_1dflow_forward(x, hidden_params, head_params, *, tile_b_max: int = 4096):
    """Pallas implementation of PINN_1DFlowA.forward.

    Args:
      x: (batch, NL[0]) float32.
      hidden_params: list of (W_i, b_i) in PyTorch layout:
                     W_i (NL[i+1], NL[i]), b_i (NL[i+1],).
      head_params: 3 tuples (W, b) with W (1, NL[-2]), b (1,).

    Returns:
      (y1, y2, y3), each (batch, 1) float32.
    """
    assert len(head_params) == 3
    n_hidden = len(hidden_params)
    assert n_hidden >= 1
    batch, in_dim = x.shape

    # Fuse the 3 scalar heads and pad to 8 rows (dense sublane store / MXU pop).
    W_head = jnp.concatenate([W.reshape(1, -1) for W, _ in head_params], axis=0)  # (3, H)
    b_head = jnp.concatenate([b.reshape(1, 1) for _, b in head_params], axis=0)   # (3, 1)
    W_head = jnp.pad(W_head, ((0, 8 - W_head.shape[0]), (0, 0)))                  # (8, H)
    b_head = jnp.pad(b_head, ((0, 8 - b_head.shape[0]), (0, 0)))                  # (8, 1)

    params = []
    for W, b in hidden_params:
        params.extend([W, b.reshape(-1, 1)])
    params.extend([W_head, b_head])
    slab, offsets = _pack_params(params)            # single resident VMEM input

    # Batch-on-lanes layout; choose the tile so the batch grid has >= 4 steps
    # when possible (both v7x TCs busy), but never a tile below 128 lanes.
    padded_batch = _round_up(batch, 128)
    target_steps = 4
    tile_b = max(128, min(_round_up(tile_b_max, 128),
                          _round_up(pl.cdiv(padded_batch, target_steps), 128)))
    padded = _round_up(padded_batch, tile_b)

    x_t = x.T.astype(jnp.float32)                   # (in_dim, batch)
    if padded != batch:
        x_t = jnp.pad(x_t, ((0, 0), (0, padded - batch)))

    grid = (padded // tile_b,)

    # Advisory cost estimate so XLA schedules the custom call sensibly.
    dims = [in_dim] + [W.shape[0] for W, _ in hidden_params] + [8]
    mac = sum(dims[i] * dims[i + 1] for i in range(len(dims) - 1))
    cost = pl.CostEstimate(
        flops=2 * padded * mac,
        transcendentals=padded * sum(dims[1:-1]),
        bytes_accessed=4 * (padded * (in_dim + 8) + int(slab.size)),
    )

    out = pl.pallas_call(
        _make_mlp_kernel(n_hidden, in_dim, offsets),
        out_shape=jax.ShapeDtypeStruct((8, padded), jnp.float32),
        grid=grid,
        in_specs=[pl.BlockSpec((in_dim, tile_b), lambda i: (0, i)),
                  pl.BlockSpec(slab.shape, lambda i: (0, 0))],   # params resident
        out_specs=pl.BlockSpec((8, tile_b), lambda i: (0, i)),
        compiler_params=pltpu.CompilerParams(
            dimension_semantics=("parallel",),      # shard batch tiles across TCs
            vmem_limit_bytes=32 * 1024 * 1024,
        ),
        cost_estimate=cost,
    )(x_t, slab)

    # Free XLA slice/transpose outside the kernel.
    y = out[:3, :batch].T                           # (batch, 3)
    return y[:, 0:1], y[:, 1:2], y[:, 2:3]


def _init_params(key, NL):
    """PyTorch-style Linear init (out_features, in_features) layout."""
    hidden_params, head_params = [], []
    keys = jax.random.split(key, 2 * (len(NL) - 2) + 6)
    k = 0
    for i in range(len(NL) - 2):
        bound = 1.0 / (NL[i] ** 0.5)
        W = jax.random.uniform(keys[k], (NL[i + 1], NL[i]), jnp.float32, -bound, bound)
        b = jax.random.uniform(keys[k + 1], (NL[i + 1],), jnp.float32, -bound, bound)
        hidden_params.append((W, b))
        k += 2
    bound = 1.0 / (NL[-2] ** 0.5)
    for _ in range(3):
        W = jax.random.uniform(keys[k], (1, NL[-2]), jnp.float32, -bound, bound)
        b = jax.random.uniform(keys[k + 1], (1,), jnp.float32, -bound, bound)
        head_params.append((W, b))
        k += 2
    return hidden_params, head_params


def _reference_forward(x, hidden_params, head_params):
    h = x
    for W, b in hidden_params:
        h = jax.nn.sigmoid(h @ W.T + b)
    return tuple(h @ W.T + b for W, b in head_params)


if __name__ == "__main__":
    # NL = [1, 32, 32, 1]: 1-D spatial coordinate in, two hidden layers of 32.
    NL = [1, 32, 32, 1]
    batch = 50   # matches the module's batch_size

    key = jax.random.PRNGKey(0)
    kx, kp = jax.random.split(key)
    x = jax.random.uniform(kx, (batch, NL[0]), jnp.float32, 0.0, 4.0)  # X in Ix=[0, 4]

    hidden_params, head_params = _init_params(kp, NL)

    y1, y2, y3 = jax.block_until_ready(
        pinn_1dflow_forward(x, hidden_params, head_params)
    )

    # Sanity check vs. an f32 reference; kernel matmuls use bf16 MXU operands,
    # so the tolerance is loosened accordingly.
    r1, r2, r3 = _reference_forward(x, hidden_params, head_params)
    assert y1.shape == (batch, 1) and y2.shape == (batch, 1) and y3.shape == (batch, 1)
    for y, r, name in ((y1, r1, "y1"), (y2, r2, "y2"), (y3, r3, "y3")):
        err = float(jnp.max(jnp.abs(y - r)))
        assert jnp.allclose(y, r, atol=2e-2, rtol=2e-2), \
            f"{name} mismatch (max abs err {err})"

    print("KERNEL_OK")
</pallas_src>

<mosaic_0001>
module attributes {stable_mosaic.version = 11 : i64} {
  func.func @kernel(%arg0: i32, %arg1: memref<1x128xf32, #tpu.memory_space<vmem>>, %arg2: memref<144x128xf32, #tpu.memory_space<vmem>>, %arg3: memref<8x128xf32, #tpu.memory_space<vmem>>) attributes {dimension_semantics = [#tpu.dimension_semantics<parallel>], iteration_bounds = array<i64: 1>, scalar_prefetch = 0 : i64, scratch_operands = 0 : i64, tpu.core_type = #tpu.core_type<tc>, window_params = [{transform_indices = @transform_0, window_bounds = array<i64: 1, 128>}, {pipeline_mode = #tpu.pipeline_mode<synchronous>, transform_indices = @transform_1, window_bounds = array<i64: 144, 128>}, {transform_indices = @transform_2, window_bounds = array<i64: 8, 128>}]} {
    %c0 = arith.constant 0 : index
    %c0_0 = arith.constant 0 : index
    %0 = vector.load %arg1[%c0, %c0_0] : memref<1x128xf32, #tpu.memory_space<vmem>>, vector<1x128xf32>
    %c0_1 = arith.constant 0 : index
    %c0_2 = arith.constant 0 : index
    %1 = vector.load %arg2[%c0_1, %c0_2] : memref<144x128xf32, #tpu.memory_space<vmem>>, vector<32x1xf32>
    %c32 = arith.constant 32 : index
    %c0_3 = arith.constant 0 : index
    %2 = vector.load %arg2[%c32, %c0_3] : memref<144x128xf32, #tpu.memory_space<vmem>>, vector<32x1xf32>
    %3 = vector.broadcast %1 : vector<32x1xf32> to vector<32x128xf32>
    %4 = vector.broadcast %0 : vector<1x128xf32> to vector<32x128xf32>
    %5 = arith.mulf %3, %4 : vector<32x128xf32>
    %6 = vector.broadcast %2 : vector<32x1xf32> to vector<32x128xf32>
    %7 = arith.addf %5, %6 : vector<32x128xf32>
    %cst = arith.constant 5.000000e-01 : f32
    %8 = vector.broadcast %cst : f32 to vector<32x128xf32>
    %9 = arith.mulf %8, %7 : vector<32x128xf32>
    %10 = math.tanh %9 : vector<32x128xf32>
    %cst_4 = arith.constant 5.000000e-01 : f32
    %11 = vector.broadcast %cst_4 : f32 to vector<32x128xf32>
    %12 = arith.mulf %11, %10 : vector<32x128xf32>
    %cst_5 = arith.constant 5.000000e-01 : f32
    %13 = vector.broadcast %cst_5 : f32 to vector<32x128xf32>
    %14 = arith.addf %12, %13 : vector<32x128xf32>
    %c64 = arith.constant 64 : index
    %c0_6 = arith.constant 0 : index
    %15 = vector.load %arg2[%c64, %c0_6] : memref<144x128xf32, #tpu.memory_space<vmem>>, vector<32x32xf32>
    %c96 = arith.constant 96 : index
    %c0_7 = arith.constant 0 : index
    %16 = vector.load %arg2[%c96, %c0_7] : memref<144x128xf32, #tpu.memory_space<vmem>>, vector<32x1xf32>
    %17 = arith.truncf %15 : vector<32x32xf32> to vector<32x32xbf16>
    %18 = arith.truncf %14 : vector<32x128xf32> to vector<32x128xbf16>
    %cst_8 = arith.constant dense<0.000000e+00> : vector<32x128xf32>
    %19 = tpu.matmul %17, %18, %cst_8 {dimension_numbers = #tpu.dot_dimension_numbers<[1], [0], [0], [1], [0, 0, 1, 1], [], []>} : vector<32x32xbf16>, vector<32x128xbf16>, vector<32x128xf32> -> vector<32x128xf32>
    %20 = vector.broadcast %16 : vector<32x1xf32> to vector<32x128xf32>
    %21 = arith.addf %19, %20 : vector<32x128xf32>
    %cst_9 = arith.constant 5.000000e-01 : f32
    %22 = vector.broadcast %cst_9 : f32 to vector<32x128xf32>
    %23 = arith.mulf %22, %21 : vector<32x128xf32>
    %24 = math.tanh %23 : vector<32x128xf32>
    %cst_10 = arith.constant 5.000000e-01 : f32
    %25 = vector.broadcast %cst_10 : f32 to vector<32x128xf32>
    %26 = arith.mulf %25, %24 : vector<32x128xf32>
    %cst_11 = arith.constant 5.000000e-01 : f32
    %27 = vector.broadcast %cst_11 : f32 to vector<32x128xf32>
    %28 = arith.addf %26, %27 : vector<32x128xf32>
    %c128 = arith.constant 128 : index
    %c0_12 = arith.constant 0 : index
    %29 = vector.load %arg2[%c128, %c0_12] : memref<144x128xf32, #tpu.memory_space<vmem>>, vector<8x32xf32>
    %c136 = arith.constant 136 : index
    %c0_13 = arith.constant 0 : index
    %30 = vector.load %arg2[%c136, %c0_13] : memref<144x128xf32, #tpu.memory_space<vmem>>, vector<8x1xf32>
    %31 = arith.truncf %29 : vector<8x32xf32> to vector<8x32xbf16>
    %32 = arith.truncf %28 : vector<32x128xf32> to vector<32x128xbf16>
    %cst_14 = arith.constant dense<0.000000e+00> : vector<8x128xf32>
    %33 = tpu.matmul %31, %32, %cst_14 {dimension_numbers = #tpu.dot_dimension_numbers<[1], [0], [0], [1], [0, 0, 1, 1], [], []>} : vector<8x32xbf16>, vector<32x128xbf16>, vector<8x128xf32> -> vector<8x128xf32>
    %34 = vector.broadcast %30 : vector<8x1xf32> to vector<8x128xf32>
    %35 = arith.addf %33, %34 : vector<8x128xf32>
    %c0_15 = arith.constant 0 : index
    %c0_16 = arith.constant 0 : index
    %36 = vector.load %arg3[%c0_15, %c0_16] : memref<8x128xf32, #tpu.memory_space<vmem>>, vector<8x128xf32>
    tpu.vector_store %arg3[%c0_15, %c0_16], %35 {strides = array<i32>} : memref<8x128xf32, #tpu.memory_space<vmem>>, vector<8x128xf32>,
    return
  }
  func.func @transform_0(%arg0: i32) -> (i32, i32) {
    %c0_i32 = arith.constant 0 : i32
    %c0_i32_0 = arith.constant 0 : i32
    return %c0_i32, %arg0 : i32, i32
  }
  func.func @transform_1(%arg0: i32) -> (i32, i32) {
    %c0_i32 = arith.constant 0 : i32
    %c0_i32_0 = arith.constant 0 : i32
    %c0_i32_1 = arith.constant 0 : i32
    return %c0_i32, %c0_i32_0 : i32, i32
  }
  func.func @transform_2(%arg0: i32) -> (i32, i32) {
    %c0_i32 = arith.constant 0 : i32
    %c0_i32_0 = arith.constant 0 : i32
    return %c0_i32, %arg0 : i32, i32
  }
}

</mosaic_0001>

<llo_original>
// kernel: tpu_custom_call.1
$region0: #{tpu_custom_call.1}
  #allocation0 [shape = 'u32[]', space=smem, size = 0x4, offset = 0x4, fixed_abs, tag = 'smem constant byte address 0x4 - core index']
  #allocation1 [shape = 'u32[144,128]{1,0:T(1,128)}', space=vmem, size = 0x12000, scoped, tag = 'internal scratch']
  %s0 = inlined_call_operand.hbm [shape: f32[1,128], index: 0, kind: input, shape index: {}]
  %s1 = inlined_call_operand.hbm [shape: f32[144,128], index: 1, kind: input, shape index: {}]
  %s2 = inlined_call_operand.hbm [shape: f32[8,128], index: 2, kind: output, shape index: {}]
  %s3 = sld [smem:[#allocation0]]
  $region26: #{tpu_custom_call.1} parent=0
    _
  %s5 = ssub.s32 1, %s3
  %s6 = scalar_select 0, %s5, %s3
  $region1: #{tpu_custom_call.1} parent=0
    #allocation2 [shape = 'u8[512]{0}', space=vmem, size = 0x400, scoped, tag = 'input window, operand 0, single buffered']
    #allocation3 [shape = 's32[1]{0}', space=sflag, size = 0x4, scoped, tag = 'scoped memory for tpu_custom_call.1']
    #allocation4 [shape = 's32[1]{0}', space=sflag, size = 0x4, scoped, tag = 'scoped memory for tpu_custom_call.1']
    #allocation5 [shape = 'u8[73728]{0}', space=vmem, size = 0x12000, scoped, tag = 'input window, operand 1, single buffered']
    #allocation6 [shape = 's32[1]{0}', space=sflag, size = 0x4, scoped, tag = 'scoped memory for tpu_custom_call.1']
    #allocation7 [shape = 'u8[4096]{0}', space=vmem, size = 0x1000, scoped, tag = 'output window, operand 0, single buffered']
    %7 = vsyncpa [#allocation3], 0
    %8 = vsyncpa [#allocation6], 0
    %9 = vsyncpa [#allocation4], 0
    // Predicated region
    $region2: #{tpu_custom_call.1} parent=1 // pred_check
      _
    $region3: #{tpu_custom_call.1} parent=1 // pred_check_branch
      %11 = sbr.rel (0) target = $region5
    $region4: #{tpu_custom_call.1} parent=1 // pred_region
      %s13 = ssub.s32 16, 16
      %14 = vsyncadd [#allocation3], %s13
      %s16 = sshll.u32 [#allocation2], 4
      %s17 = int_to_ptr.vmem [resolvable:$true] %s16
      %19 = dma.hbm_to_vmem [thread:$0]  %s0, 16, %s17, [#allocation3]
    $region5: #{tpu_custom_call.1} parent=1 // pred_fallthru
      _
    // Predicated region
    $region6: #{tpu_custom_call.1} parent=1 // pred_check
      _
    $region7: #{tpu_custom_call.1} parent=1 // pred_check_branch
      %21 = sbr.rel (0) target = $region9
    $region8: #{tpu_custom_call.1} parent=1 // pred_region
      %s23 = ssub.s32 2304, 2304
      %24 = vsyncadd [#allocation6], %s23
      %s25 = sshll.u32 [#allocation5], 4
      %s26 = int_to_ptr.vmem [resolvable:$true] %s25
      %31 = dma.hbm_to_vmem [thread:$0]  %s1, 2304, %s26, [#allocation6], 128, 128, 8
    $region9: #{tpu_custom_call.1} parent=1 // pred_fallthru
      _
    // Predicated region
    $region10: #{tpu_custom_call.1} parent=1 // pred_check
      _
    $region11: #{tpu_custom_call.1} parent=1 // pred_check_branch
      %33 = sbr.rel (0) target = $region13
    $region12: #{tpu_custom_call.1} parent=1 // pred_region
      %34 = dma.done [#allocation3], 16
    $region13: #{tpu_custom_call.1} parent=1 // pred_fallthru
      _
    // Predicated region
    $region14: #{tpu_custom_call.1} parent=1 // pred_check
      _
    $region15: #{tpu_custom_call.1} parent=1 // pred_check_branch
      %36 = sbr.rel (0) target = $region17
    $region16: #{tpu_custom_call.1} parent=1 // pred_region
      %37 = dma.done [#allocation6], 2304
    $region17: #{tpu_custom_call.1} parent=1 // pred_fallthru
      _
    %v39 = vld [vmem:[#allocation2] sm:$0x1]
    %v40 = vld [vmem:[#allocation5] sm:$0xff]
    %v41 = vld [vmem:[#allocation5 + $0x8] sm:$0xff]
    %v42 = vld [vmem:[#allocation5 + $0x10] sm:$0xff]
    %v43 = vld [vmem:[#allocation5 + $0x18] sm:$0xff]
    %v44 = vld [vmem:[#allocation5 + $0x20] sm:$0xff]
    %v45 = vld [vmem:[#allocation5 + $0x28] sm:$0xff]
    %v46 = vld [vmem:[#allocation5 + $0x30] sm:$0xff]
    %v47 = vld [vmem:[#allocation5 + $0x38] sm:$0xff]
    %49 = vset.pattern.permute.xlu0 0
    %50 = vperm.xlu0 %49, %v40
    %v51 = vpop.permute.xlu0 %50
    %54 = vset.pattern.permute.xlu0 0
    %55 = vperm.xlu0 %54, %v41
    %v56 = vpop.permute.xlu0 %55
    %59 = vset.pattern.permute.xlu0 0
    %60 = vperm.xlu0 %59, %v42
    %v61 = vpop.permute.xlu0 %60
    %64 = vset.pattern.permute.xlu0 0
    %65 = vperm.xlu0 %64, %v43
    %v66 = vpop.permute.xlu0 %65
    %v69 = vlaneseq
    %v70 = vshrl.u32 %v69, 7
    %v71 = vsub.s32 0, %v70
    %v72 = vrot.slane %v39, %v71
    %v74 = vmul.f32 %v51, %v72
    %v75 = vmul.f32 %v56, %v72
    %v76 = vmul.f32 %v61, %v72
    %v77 = vmul.f32 %v66, %v72
    %79 = vset.pattern.permute.xlu0 0
    %80 = vperm.xlu0 %79, %v44
    %v81 = vpop.permute.xlu0 %80
    %84 = vset.pattern.permute.xlu0 0
    %85 = vperm.xlu0 %84, %v45
    %v86 = vpop.permute.xlu0 %85
    %89 = vset.pattern.permute.xlu0 0
    %90 = vperm.xlu0 %89, %v46
    %v91 = vpop.permute.xlu0 %90
    %94 = vset.pattern.permute.xlu0 0
    %95 = vperm.xlu0 %94, %v47
    %v96 = vpop.permute.xlu0 %95
    %v98 = vadd.f32 %v74, %v81
    %v99 = vadd.f32 %v75, %v86
    %v100 = vadd.f32 %v76, %v91
    %v101 = vadd.f32 %v77, %v96
    %v102 = vmul.f32 %v98, 0.5
    %v103 = vmul.f32 %v99, 0.5
    %v104 = vmul.f32 %v100, 0.5
    %v105 = vmul.f32 %v101, 0.5
    %v106 = vtanh.pop %v102
    %v107 = vtanh.pop %v103
    %v108 = vtanh.pop %v104
    %v109 = vtanh.pop %v105
    %v110 = vmul.f32 %v106, 0.5
    %v111 = vmul.f32 %v107, 0.5
    %v112 = vmul.f32 %v108, 0.5
    %v113 = vmul.f32 %v109, 0.5
    %v114 = vadd.f32 %v110, 0.5
    %v115 = vadd.f32 %v111, 0.5
    %v116 = vadd.f32 %v112, 0.5
    %v117 = vadd.f32 %v113, 0.5
    %v118 = vld [vmem:[#allocation5 + $0x40] sm:$0xff]
    %v119 = vld [vmem:[#allocation5 + $0x48] sm:$0xff]
    %v120 = vld [vmem:[#allocation5 + $0x50] sm:$0xff]
    %v121 = vld [vmem:[#allocation5 + $0x58] sm:$0xff]
    %v122 = vld [vmem:[#allocation5 + $0x60] sm:$0xff]
    %v123 = vld [vmem:[#allocation5 + $0x68] sm:$0xff]
    %v124 = vld [vmem:[#allocation5 + $0x70] sm:$0xff]
    %v125 = vld [vmem:[#allocation5 + $0x78] sm:$0xff]
    %v126 = vpack.c.bf16 %v119, %v118
    %v127 = vpack.c.bf16 %v121, %v120
    %v128 = vpack.c.bf16 %v115, %v114
    %v129 = vpack.c.bf16 %v117, %v116
    %131 = vset.pattern.permute.xlu0 0
    %132 = vperm.xlu0 %131, %v122
    %v133 = vpop.permute.xlu0 %132
    %136 = vset.pattern.permute.xlu0 0
    %137 = vperm.xlu0 %136, %v123
    %v138 = vpop.permute.xlu0 %137
    %141 = vset.pattern.permute.xlu0 0
    %142 = vperm.xlu0 %141, %v124
    %v143 = vpop.permute.xlu0 %142
    %146 = vset.pattern.permute.xlu0 0
    %147 = vperm.xlu0 %146, %v125
    %v148 = vpop.permute.xlu0 %147
    %vm150 = vcmask 261120
    %v152 = vsel %vm150, %v126, 0
    %v155 = vsel %vm150, %v127, 0
    %157 = vmatprep.subr.bf16.mxu0 0
    %158 = vmatpush1.bf16.msra.mxu0 %v128
    %159 = vmatprep.subr.bf16.mxu0 0
    %160 = vmatpush1.bf16.msra.mxu0 %v129
    %161 = vmatprep.subr.bf16.mxu0 0
    %162 = vmatpush1.bf16.msra.mxu0 0
    %163 = vmatprep.subr.bf16.mxu0 0
    %164 = vmatpush1.bf16.msra.mxu0 0
    %165 = vmatprep.subr.bf16.mxu0 0
    %166 = vmatpush1.bf16.msra.mxu0 0
    %167 = vmatprep.subr.bf16.mxu0 0
    %168 = vmatpush1.bf16.msra.mxu0 0
    %169 = vmatprep.subr.bf16.mxu0 0
    %170 = vmatpush1.bf16.msra.mxu0 0
    %171 = vmatprep.subr.bf16.mxu0 0
    %172 = vmatpush1.bf16.msra.mxu0 0
    %173 = vmatprep.subr.bf16.mxu0 0
    %174 = vmatpush1.bf16.msra.mxu0 0
    %175 = vmatprep.subr.bf16.mxu0 0
    %176 = vmatpush1.bf16.msra.mxu0 0
    %177 = vmatprep.subr.bf16.mxu0 0
    %178 = vmatpush1.bf16.msra.mxu0 0
    %179 = vmatprep.subr.bf16.mxu0 0
    %180 = vmatpush1.bf16.msra.mxu0 0
    %181 = vmatprep.subr.bf16.mxu0 0
    %182 = vmatpush1.bf16.msra.mxu0 0
    %183 = vmatprep.subr.bf16.mxu0 0
    %184 = vmatpush1.bf16.msra.mxu0 0
    %185 = vmatprep.subr.bf16.mxu0 0
    %186 = vmatpush1.bf16.msra.mxu0 0
    %187 = vmatprep.subr.bf16.mxu0 0
    %188 = vmatpush1.bf16.msra.mxu0 0
    %189 = vmatprep.mubr.bf16.mxu0 0
    %190 = vmatmul.mubr.bf16.gmra.mrb[0].mxu0 %v152
    %v191 = vpop.f32.mrb[0].mxu0
    %v192 = vadd.f32 %v133, %v191
    %v193 = vpop.f32.mrb[0].mxu0
    %v194 = vpop.f32.mrb[0].mxu0
    %v195 = vadd.f32 %v138, %v194
    %v196 = vpop.f32.mrb[0].mxu0
    %197 = vmatprep.mubr.bf16.mxu0 0
    %198 = vmatmul.mubr.bf16.gmra.mrb[0].mxu0 %v155
    %v199 = vpop.f32.mrb[0].mxu0
    %v200 = vadd.f32 %v143, %v199
    %v201 = vpop.f32.mrb[0].mxu0
    %v202 = vpop.f32.mrb[0].mxu0
    %v203 = vadd.f32 %v148, %v202
    %v204 = vpop.f32.mrb[0].mxu0
    %205 = vdwg.mxu0
    %v206 = vmul.f32 %v192, 0.5
    %v207 = vmul.f32 %v195, 0.5
    %v208 = vmul.f32 %v200, 0.5
    %v209 = vmul.f32 %v203, 0.5
    %v210 = vtanh.pop %v206
    %v211 = vtanh.pop %v207
    %v212 = vtanh.pop %v208
    %v213 = vtanh.pop %v209
    %v214 = vmul.f32 %v210, 0.5
    %v215 = vmul.f32 %v211, 0.5
    %v216 = vmul.f32 %v212, 0.5
    %v217 = vmul.f32 %v213, 0.5
    %v218 = vadd.f32 %v214, 0.5
    %v219 = vadd.f32 %v215, 0.5
    %v220 = vadd.f32 %v216, 0.5
    %v221 = vadd.f32 %v217, 0.5
    %v222 = vld [vmem:[#allocation5 + $0x80] sm:$0xff]
    %v223 = vld [vmem:[#allocation5 + $0x88] sm:$0xff]
    %v224 = vpack.c.bf16 %v222, %v222
    %v225 = vpack.c.bf16 %v219, %v218
    %v226 = vpack.c.bf16 %v221, %v220
    %228 = vset.pattern.permute.xlu0 0
    %229 = vperm.xlu0 %228, %v223
    %v230 = vpop.permute.xlu0 %229
    %v233 = vsel %vm150, %v224, 0
    %235 = vmatprep.subr.bf16.mxu0 0
    %236 = vmatpush1.bf16.msra.mxu0 %v225
    %237 = vmatprep.subr.bf16.mxu0 0
    %238 = vmatpush1.bf16.msra.mxu0 %v226
    %239 = vmatprep.subr.bf16.mxu0 0
    %240 = vmatpush1.bf16.msra.mxu0 0
    %241 = vmatprep.subr.bf16.mxu0 0
    %242 = vmatpush1.bf16.msra.mxu0 0
    %243 = vmatprep.subr.bf16.mxu0 0
    %244 = vmatpush1.bf16.msra.mxu0 0
    %245 = vmatprep.subr.bf16.mxu0 0
    %246 = vmatpush1.bf16.msra.mxu0 0
    %247 = vmatprep.subr.bf16.mxu0 0
    %248 = vmatpush1.bf16.msra.mxu0 0
    %249 = vmatprep.subr.bf16.mxu0 0
    %250 = vmatpush1.bf16.msra.mxu0 0
    %251 = vmatprep.subr.bf16.mxu0 0
    %252 = vmatpush1.bf16.msra.mxu0 0
    %253 = vmatprep.subr.bf16.mxu0 0
    %254 = vmatpush1.bf16.msra.mxu0 0
    %255 = vmatprep.subr.bf16.mxu0 0
    %256 = vmatpush1.bf16.msra.mxu0 0
    %257 = vmatprep.subr.bf16.mxu0 0
    %258 = vmatpush1.bf16.msra.mxu0 0
    %259 = vmatprep.subr.bf16.mxu0 0
    %260 = vmatpush1.bf16.msra.mxu0 0
    %261 = vmatprep.subr.bf16.mxu0 0
    %262 = vmatpush1.bf16.msra.mxu0 0
    %263 = vmatprep.subr.bf16.mxu0 0
    %264 = vmatpush1.bf16.msra.mxu0 0
    %265 = vmatprep.subr.bf16.mxu0 0
    %266 = vmatpush1.bf16.msra.mxu0 0
    %267 = vmatprep.mubr.bf16.mxu0 0
    %268 = vmatmul.mubr.bf16.gmra.mrb[0].mxu0 %v233
    %v269 = vpop.f32.mrb[0].mxu0
    %v270 = vadd.f32 %v230, %v269
    %v271 = vpop.f32.mrb[0].mxu0
    %v272 = vpop.f32.mrb[0].mxu0
    %v273 = vpop.f32.mrb[0].mxu0
    %274 = vdwg.mxu0
    %275 = vst [vmem:[#allocation7] sm:$0xff] %v270
    // Predicated region
    $region18: #{tpu_custom_call.1} parent=1 // pred_check
      _
    $region19: #{tpu_custom_call.1} parent=1 // pred_check_branch
      %277 = sbr.rel (0) target = $region21
    $region20: #{tpu_custom_call.1} parent=1 // pred_region
      %s279 = ssub.s32 128, 128
      %280 = vsyncadd [#allocation4], %s279
      %s282 = sshll.u32 [#allocation7], 4
      %s283 = int_to_ptr.vmem [resolvable:$true] %s282
      %285 = dma.vmem_to_hbm [thread:$0]  %s283, 128, %s2, [#allocation4]
    $region21: #{tpu_custom_call.1} parent=1 // pred_fallthru
      _
    // Predicated region
    $region22: #{tpu_custom_call.1} parent=1 // pred_check
      _
    $region23: #{tpu_custom_call.1} parent=1 // pred_check_branch
      %287 = sbr.rel (0) target = $region25
    $region24: #{tpu_custom_call.1} parent=1 // pred_region
      %288 = dma.done [#allocation4], 128
    $region25: #{tpu_custom_call.1} parent=1 // pred_fallthru
      _
    %289 = vsyncpa [#allocation3], 1
    %290 = vsyncpa [#allocation6], 1
    %291 = vsyncpa [#allocation4], 1

</llo_original>
